<compile_context>
chip_gen: v5e
topology: v5e:2x2
jax: 0.10.0
libtpu: 0.0.40
codegen_flags: <defaults>
</compile_context>

<pallas_src>
import jax
import jax.numpy as jnp
from jax.experimental import pallas as pl
from jax.experimental.pallas import tpu as pltpu


_VPU_CHANNEL_THRESHOLD = 32  # below this, the MXU is hopelessly underutilized


# --------------------------------------------------------------------------
# Kernels
# --------------------------------------------------------------------------
def _resblock_kernel_vpu(x_ref, w1_ref, b1_ref, w2_ref, b2_ref, o_ref):
    """Small-C path: unrolled VPU broadcast-MACs, all math in f32."""
    C = x_ref.shape[0]
    x = x_ref[...].astype(jnp.float32)                     # (C, Lt) f32
    w1 = w1_ref[...]                                       # (C, C) f32
    w2 = w2_ref[...]                                       # (C, C) f32

    # h = ReLU( W1' @ x + b1 )   (BN1 folded into W1'/b1)
    h = b1_ref[...] + w1[:, 0:1] * x[0:1, :]
    for k in range(1, C):
        h = h + w1[:, k:k + 1] * x[k:k + 1, :]
    h = jnp.maximum(h, 0.0)

    # out = ReLU( W2' @ h + b2 + x )   (residual folded into the accumulator init)
    o = b2_ref[...] + x
    for k in range(C):
        o = o + w2[:, k:k + 1] * h[k:k + 1, :]
    o_ref[...] = jnp.maximum(o, 0.0).astype(o_ref.dtype)


def _resblock_kernel_mxu(x_ref, w1_ref, b1_ref, w2_ref, b2_ref, o_ref):
    """Large-C path: two MXU matmuls with f32 accumulation; hidden kept in f32."""
    x = x_ref[...]                                                     # (C, Lt)
    h = jnp.dot(w1_ref[...], x, preferred_element_type=jnp.float32)   # act x act
    h = jnp.maximum(h + b1_ref[...], 0.0)                              # f32
    # Keep h in f32 for the second matmul (no extra HBM traffic, tighter accuracy).
    o = jnp.dot(w2_ref[...], h, preferred_element_type=jnp.float32)
    o = o + b2_ref[...] + x.astype(jnp.float32)                        # residual
    o_ref[...] = jnp.maximum(o, 0.0).astype(o_ref.dtype)


# --------------------------------------------------------------------------
# Block sizing / VMEM budgeting
# --------------------------------------------------------------------------
def _round_up(v, m):
    return -(-v // m) * m


def _vmem_budget_bytes():
    """Generation-aware VMEM budget (per TensorCore)."""
    cap = 64 * 1024 * 1024  # conservative default == v7x per-TC physical VMEM
    try:
        cap = int(getattr(pltpu.get_tpu_info(), "vmem_capacity_bytes", cap))
    except Exception:
        pass
    # ~48 MiB on v7x (64 MiB physical), ~96 MiB on v5e/v6e (128 MiB physical).
    return int(min(cap * 3 // 4, 100 * 1024 * 1024))


def _choose_block_l(N, C, L, x_item, out_item, w_item, budget):
    """Largest lane-dense L block (multiple of 128) that fits the VMEM budget,
    split so padding is minimal and the grid has >= 2 steps (both v7x TCs fed)."""
    per_col = C * (2 * x_item + 2 * out_item + 3 * 4)  # dbl-buffered I/O + f32 temps
    resident = 2 * (2 * C * C * w_item + 2 * C * 4)    # weights + shifts (dbl-buffered)
    avail = max(budget - resident, 1 << 20)
    max_bl = max((avail // per_col) // 128 * 128, 128)
    max_bl = min(max_bl, 32768)                        # sanity cap

    bl = min(max_bl, _round_up(L, 128))
    nb = max(1, -(-L // bl))
    if N * nb < 2 and L > 128:                         # ensure >= 2 grid steps
        nb = 2
    bl = max(128, _round_up(-(-L // nb), 128))         # even split, 128-aligned
    return bl, nb * bl


# --------------------------------------------------------------------------
# Wrapper
# --------------------------------------------------------------------------
def resblock_forward(x, w1, b1, w2, b2):
    """x: (N, C, L); w1/w2: (C, C) BN-folded 1x1-conv weights; b1/b2: (C,) or (C,1)."""
    N, C, L = x.shape
    act_dt = x.dtype
    use_vpu = C <= _VPU_CHANNEL_THRESHOLD

    # VPU path keeps weights in f32 (all math f32); MXU path runs the first
    # matmul at the activation dtype (bf16 x bf16 when the caller feeds bf16).
    w_dt = jnp.float32 if use_vpu else act_dt
    w1 = w1.astype(w_dt)
    w2 = w2.astype(w_dt)
    b1 = b1.reshape(C, 1).astype(jnp.float32)
    b2 = b2.reshape(C, 1).astype(jnp.float32)

    budget = _vmem_budget_bytes()
    x_item = jnp.dtype(act_dt).itemsize
    block_l, l_pad = _choose_block_l(N, C, L, x_item, x_item,
                                     jnp.dtype(w_dt).itemsize, budget)
    if l_pad != L:
        x = jnp.pad(x, ((0, 0), (0, 0), (0, l_pad - L)))

    grid = (N, l_pad // block_l)
    slab_spec = pl.BlockSpec((None, C, block_l), lambda n, l: (n, 0, l))
    full = lambda n, l: (0, 0)

    kernel = _resblock_kernel_vpu if use_vpu else _resblock_kernel_mxu

    out = pl.pallas_call(
        kernel,
        out_shape=jax.ShapeDtypeStruct((N, C, l_pad), act_dt),
        grid=grid,
        in_specs=[
            slab_spec,                      # x tile (C, block_l), batch dim squeezed
            pl.BlockSpec((C, C), full),     # W1 (BN1 scale folded in), VMEM-resident
            pl.BlockSpec((C, 1), full),     # BN1 shift (+conv bias)
            pl.BlockSpec((C, C), full),     # W2 (BN2 scale folded in)
            pl.BlockSpec((C, 1), full),     # BN2 shift (+conv bias)
        ],
        out_specs=slab_spec,
        compiler_params=pltpu.CompilerParams(
            dimension_semantics=("parallel", "parallel"),
            vmem_limit_bytes=int(budget),
        ),
    )(x, w1, b1, w2, b2)

    if l_pad != L:
        out = out[:, :, :L]
    return out


def fold_bn_into_conv(w, conv_bias, gamma, beta, running_mean, running_var, eps=1e-5):
    """Fold eval-mode BatchNorm1d + conv bias into the 1x1-conv weight & a shift."""
    scale = gamma / jnp.sqrt(running_var + eps)                       # (C,)
    w_folded = (scale[:, None] * w).astype(jnp.float32)               # (C, C)
    shift = (beta + scale * (conv_bias - running_mean)).reshape(-1, 1)
    return w_folded, shift.astype(jnp.float32)


# --------------------------------------------------------------------------
# Self-test
# --------------------------------------------------------------------------
if __name__ == "__main__":
    def make_params(key, C):
        keys = jax.random.split(key, 12)
        w1 = (0.3 * jax.random.normal(keys[0], (C, C))).astype(jnp.float32)
        cb1 = (0.1 * jax.random.normal(keys[1], (C,))).astype(jnp.float32)
        w2 = (0.3 * jax.random.normal(keys[2], (C, C))).astype(jnp.float32)
        cb2 = (0.1 * jax.random.normal(keys[3], (C,))).astype(jnp.float32)
        g1 = (1.0 + 0.1 * jax.random.normal(keys[4], (C,))).astype(jnp.float32)
        be1 = (0.05 * jax.random.normal(keys[5], (C,))).astype(jnp.float32)
        m1 = (0.1 * jax.random.normal(keys[6], (C,))).astype(jnp.float32)
        v1 = (1.0 + 0.1 * jax.random.uniform(keys[7], (C,))).astype(jnp.float32)
        g2 = (1.0 + 0.1 * jax.random.normal(keys[8], (C,))).astype(jnp.float32)
        be2 = (0.05 * jax.random.normal(keys[9], (C,))).astype(jnp.float32)
        m2 = (0.1 * jax.random.normal(keys[10], (C,))).astype(jnp.float32)
        v2 = (1.0 + 0.1 * jax.random.uniform(keys[11], (C,))).astype(jnp.float32)
        return (w1, cb1, w2, cb2, g1, be1, m1, v1, g2, be2, m2, v2)

    def ref_forward(xf, p):
        (w1, cb1, w2, cb2, g1, be1, m1, v1, g2, be2, m2, v2) = p
        h = jnp.einsum("oc,ncl->nol", w1, xf) + cb1[None, :, None]
        h = (h - m1[None, :, None]) / jnp.sqrt(v1[None, :, None] + 1e-5) \
            * g1[None, :, None] + be1[None, :, None]
        h = jnp.maximum(h, 0.0)
        h = jnp.einsum("oc,ncl->nol", w2, h) + cb2[None, :, None]
        h = (h - m2[None, :, None]) / jnp.sqrt(v2[None, :, None] + 1e-5) \
            * g2[None, :, None] + be2[None, :, None]
        return jnp.maximum(h + xf, 0.0)

    key = jax.random.PRNGKey(0)
    k_small, k_big, kx1, kx2 = jax.random.split(key, 4)

    # ---- Small-C (VPU) path: module defaults (1x1 conv, input_length=256). ----
    N, C, L = 2, 8, 256
    p = make_params(k_small, C)
    w1f, b1f = fold_bn_into_conv(p[0], p[1], p[4], p[5], p[6], p[7])
    w2f, b2f = fold_bn_into_conv(p[2], p[3], p[8], p[9], p[10], p[11])
    x = jax.random.normal(kx1, (N, C, L), dtype=jnp.float32)
    expected = ref_forward(x, p)

    out = jax.block_until_ready(resblock_forward(x, w1f, b1f, w2f, b2f))
    assert out.shape == (N, C, L) and out.dtype == jnp.float32
    assert jnp.allclose(out, expected, atol=2e-4, rtol=2e-4)

    # bf16 activations (recommended HBM I/O path; in-kernel math stays f32).
    out_bf16 = jax.block_until_ready(
        resblock_forward(x.astype(jnp.bfloat16), w1f, b1f, w2f, b2f))
    assert out_bf16.dtype == jnp.bfloat16
    assert jnp.allclose(out_bf16.astype(jnp.float32), expected, atol=1e-1, rtol=1e-1)

    # ---- Larger-C (MXU) path, bf16 I/O, L not a multiple of 128 (padding). ----
    N2, C2, L2 = 2, 128, 200
    p2 = make_params(k_big, C2)
    w1f2, b1f2 = fold_bn_into_conv(p2[0], p2[1], p2[4], p2[5], p2[6], p2[7])
    w2f2, b2f2 = fold_bn_into_conv(p2[2], p2[3], p2[8], p2[9], p2[10], p2[11])
    x2 = jax.random.normal(kx2, (N2, C2, L2), dtype=jnp.float32)
    expected2 = ref_forward(x2, p2)

    out2 = jax.block_until_ready(
        resblock_forward(x2.astype(jnp.bfloat16), w1f2, b1f2, w2f2, b2f2))
    assert out2.shape == (N2, C2, L2) and out2.dtype == jnp.bfloat16
    assert jnp.allclose(out2.astype(jnp.float32), expected2, atol=2e-1, rtol=2e-1)

    print("KERNEL_OK")
</pallas_src>

<mosaic_0001>
module attributes {stable_mosaic.version = 11 : i64} {
  func.func @_resblock_kernel_vpu(%arg0: i32, %arg1: i32, %arg2: memref<1x8x256xf32, #tpu.memory_space<vmem>>, %arg3: memref<8x8xf32, #tpu.memory_space<vmem>>, %arg4: memref<8x1xf32, #tpu.memory_space<vmem>>, %arg5: memref<8x8xf32, #tpu.memory_space<vmem>>, %arg6: memref<8x1xf32, #tpu.memory_space<vmem>>, %arg7: memref<1x8x256xf32, #tpu.memory_space<vmem>>) attributes {dimension_semantics = [#tpu.dimension_semantics<parallel>, #tpu.dimension_semantics<parallel>], iteration_bounds = array<i64: 2, 1>, scalar_prefetch = 0 : i64, scratch_operands = 0 : i64, tpu.core_type = #tpu.core_type<tc>, window_params = [{transform_indices = @transform_0, window_bounds = array<i64: 1, 8, 256>}, {pipeline_mode = #tpu.pipeline_mode<synchronous>, transform_indices = @transform_1, window_bounds = array<i64: 8, 8>}, {pipeline_mode = #tpu.pipeline_mode<synchronous>, transform_indices = @transform_2, window_bounds = array<i64: 8, 1>}, {pipeline_mode = #tpu.pipeline_mode<synchronous>, transform_indices = @transform_3, window_bounds = array<i64: 8, 8>}, {pipeline_mode = #tpu.pipeline_mode<synchronous>, transform_indices = @transform_4, window_bounds = array<i64: 8, 1>}, {transform_indices = @transform_5, window_bounds = array<i64: 1, 8, 256>}]} {
    %c0 = arith.constant 0 : index
    %c0_0 = arith.constant 0 : index
    %c0_1 = arith.constant 0 : index
    %0 = vector.load %arg2[%c0, %c0_0, %c0_1] : memref<1x8x256xf32, #tpu.memory_space<vmem>>, vector<1x8x256xf32>
    %1 = vector.shape_cast %0 : vector<1x8x256xf32> to vector<8x256xf32>
    %c0_2 = arith.constant 0 : index
    %c0_3 = arith.constant 0 : index
    %2 = vector.load %arg3[%c0_2, %c0_3] : memref<8x8xf32, #tpu.memory_space<vmem>>, vector<8x8xf32>
    %c0_4 = arith.constant 0 : index
    %c0_5 = arith.constant 0 : index
    %3 = vector.load %arg5[%c0_4, %c0_5] : memref<8x8xf32, #tpu.memory_space<vmem>>, vector<8x8xf32>
    %c0_6 = arith.constant 0 : index
    %c0_7 = arith.constant 0 : index
    %4 = vector.load %arg4[%c0_6, %c0_7] : memref<8x1xf32, #tpu.memory_space<vmem>>, vector<8x1xf32>
    %5 = vector.extract_strided_slice %2 {offsets = [0, 0], sizes = [8, 1], strides = [1, 1]} : vector<8x8xf32> to vector<8x1xf32>
    %6 = vector.extract_strided_slice %1 {offsets = [0, 0], sizes = [1, 256], strides = [1, 1]} : vector<8x256xf32> to vector<1x256xf32>
    %7 = vector.broadcast %5 : vector<8x1xf32> to vector<8x256xf32>
    %8 = vector.broadcast %6 : vector<1x256xf32> to vector<8x256xf32>
    %9 = arith.mulf %7, %8 : vector<8x256xf32>
    %10 = vector.broadcast %4 : vector<8x1xf32> to vector<8x256xf32>
    %11 = arith.addf %10, %9 : vector<8x256xf32>
    %12 = vector.extract_strided_slice %2 {offsets = [0, 1], sizes = [8, 1], strides = [1, 1]} : vector<8x8xf32> to vector<8x1xf32>
    %13 = vector.extract_strided_slice %1 {offsets = [1, 0], sizes = [1, 256], strides = [1, 1]} : vector<8x256xf32> to vector<1x256xf32>
    %14 = vector.broadcast %12 : vector<8x1xf32> to vector<8x256xf32>
    %15 = vector.broadcast %13 : vector<1x256xf32> to vector<8x256xf32>
    %16 = arith.mulf %14, %15 : vector<8x256xf32>
    %17 = arith.addf %11, %16 : vector<8x256xf32>
    %18 = vector.extract_strided_slice %2 {offsets = [0, 2], sizes = [8, 1], strides = [1, 1]} : vector<8x8xf32> to vector<8x1xf32>
    %19 = vector.extract_strided_slice %1 {offsets = [2, 0], sizes = [1, 256], strides = [1, 1]} : vector<8x256xf32> to vector<1x256xf32>
    %20 = vector.broadcast %18 : vector<8x1xf32> to vector<8x256xf32>
    %21 = vector.broadcast %19 : vector<1x256xf32> to vector<8x256xf32>
    %22 = arith.mulf %20, %21 : vector<8x256xf32>
    %23 = arith.addf %17, %22 : vector<8x256xf32>
    %24 = vector.extract_strided_slice %2 {offsets = [0, 3], sizes = [8, 1], strides = [1, 1]} : vector<8x8xf32> to vector<8x1xf32>
    %25 = vector.extract_strided_slice %1 {offsets = [3, 0], sizes = [1, 256], strides = [1, 1]} : vector<8x256xf32> to vector<1x256xf32>
    %26 = vector.broadcast %24 : vector<8x1xf32> to vector<8x256xf32>
    %27 = vector.broadcast %25 : vector<1x256xf32> to vector<8x256xf32>
    %28 = arith.mulf %26, %27 : vector<8x256xf32>
    %29 = arith.addf %23, %28 : vector<8x256xf32>
    %30 = vector.extract_strided_slice %2 {offsets = [0, 4], sizes = [8, 1], strides = [1, 1]} : vector<8x8xf32> to vector<8x1xf32>
    %31 = vector.extract_strided_slice %1 {offsets = [4, 0], sizes = [1, 256], strides = [1, 1]} : vector<8x256xf32> to vector<1x256xf32>
    %32 = vector.broadcast %30 : vector<8x1xf32> to vector<8x256xf32>
    %33 = vector.broadcast %31 : vector<1x256xf32> to vector<8x256xf32>
    %34 = arith.mulf %32, %33 : vector<8x256xf32>
    %35 = arith.addf %29, %34 : vector<8x256xf32>
    %36 = vector.extract_strided_slice %2 {offsets = [0, 5], sizes = [8, 1], strides = [1, 1]} : vector<8x8xf32> to vector<8x1xf32>
    %37 = vector.extract_strided_slice %1 {offsets = [5, 0], sizes = [1, 256], strides = [1, 1]} : vector<8x256xf32> to vector<1x256xf32>
    %38 = vector.broadcast %36 : vector<8x1xf32> to vector<8x256xf32>
    %39 = vector.broadcast %37 : vector<1x256xf32> to vector<8x256xf32>
    %40 = arith.mulf %38, %39 : vector<8x256xf32>
    %41 = arith.addf %35, %40 : vector<8x256xf32>
    %42 = vector.extract_strided_slice %2 {offsets = [0, 6], sizes = [8, 1], strides = [1, 1]} : vector<8x8xf32> to vector<8x1xf32>
    %43 = vector.extract_strided_slice %1 {offsets = [6, 0], sizes = [1, 256], strides = [1, 1]} : vector<8x256xf32> to vector<1x256xf32>
    %44 = vector.broadcast %42 : vector<8x1xf32> to vector<8x256xf32>
    %45 = vector.broadcast %43 : vector<1x256xf32> to vector<8x256xf32>
    %46 = arith.mulf %44, %45 : vector<8x256xf32>
    %47 = arith.addf %41, %46 : vector<8x256xf32>
    %48 = vector.extract_strided_slice %2 {offsets = [0, 7], sizes = [8, 1], strides = [1, 1]} : vector<8x8xf32> to vector<8x1xf32>
    %49 = vector.extract_strided_slice %1 {offsets = [7, 0], sizes = [1, 256], strides = [1, 1]} : vector<8x256xf32> to vector<1x256xf32>
    %50 = vector.broadcast %48 : vector<8x1xf32> to vector<8x256xf32>
    %51 = vector.broadcast %49 : vector<1x256xf32> to vector<8x256xf32>
    %52 = arith.mulf %50, %51 : vector<8x256xf32>
    %53 = arith.addf %47, %52 : vector<8x256xf32>
    %cst = arith.constant 0.000000e+00 : f32
    %54 = vector.broadcast %cst : f32 to vector<8x256xf32>
    %55 = arith.maximumf %53, %54 : vector<8x256xf32>
    %c0_8 = arith.constant 0 : index
    %c0_9 = arith.constant 0 : index
    %56 = vector.load %arg6[%c0_8, %c0_9] : memref<8x1xf32, #tpu.memory_space<vmem>>, vector<8x1xf32>
    %57 = vector.broadcast %56 : vector<8x1xf32> to vector<8x256xf32>
    %58 = arith.addf %57, %1 : vector<8x256xf32>
    %59 = vector.extract_strided_slice %3 {offsets = [0, 0], sizes = [8, 1], strides = [1, 1]} : vector<8x8xf32> to vector<8x1xf32>
    %60 = vector.extract_strided_slice %55 {offsets = [0, 0], sizes = [1, 256], strides = [1, 1]} : vector<8x256xf32> to vector<1x256xf32>
    %61 = vector.broadcast %59 : vector<8x1xf32> to vector<8x256xf32>
    %62 = vector.broadcast %60 : vector<1x256xf32> to vector<8x256xf32>
    %63 = arith.mulf %61, %62 : vector<8x256xf32>
    %64 = arith.addf %58, %63 : vector<8x256xf32>
    %65 = vector.extract_strided_slice %3 {offsets = [0, 1], sizes = [8, 1], strides = [1, 1]} : vector<8x8xf32> to vector<8x1xf32>
    %66 = vector.extract_strided_slice %55 {offsets = [1, 0], sizes = [1, 256], strides = [1, 1]} : vector<8x256xf32> to vector<1x256xf32>
    %67 = vector.broadcast %65 : vector<8x1xf32> to vector<8x256xf32>
    %68 = vector.broadcast %66 : vector<1x256xf32> to vector<8x256xf32>
    %69 = arith.mulf %67, %68 : vector<8x256xf32>
    %70 = arith.addf %64, %69 : vector<8x256xf32>
    %71 = vector.extract_strided_slice %3 {offsets = [0, 2], sizes = [8, 1], strides = [1, 1]} : vector<8x8xf32> to vector<8x1xf32>
    %72 = vector.extract_strided_slice %55 {offsets = [2, 0], sizes = [1, 256], strides = [1, 1]} : vector<8x256xf32> to vector<1x256xf32>
    %73 = vector.broadcast %71 : vector<8x1xf32> to vector<8x256xf32>
    %74 = vector.broadcast %72 : vector<1x256xf32> to vector<8x256xf32>
    %75 = arith.mulf %73, %74 : vector<8x256xf32>
    %76 = arith.addf %70, %75 : vector<8x256xf32>
    %77 = vector.extract_strided_slice %3 {offsets = [0, 3], sizes = [8, 1], strides = [1, 1]} : vector<8x8xf32> to vector<8x1xf32>
    %78 = vector.extract_strided_slice %55 {offsets = [3, 0], sizes = [1, 256], strides = [1, 1]} : vector<8x256xf32> to vector<1x256xf32>
    %79 = vector.broadcast %77 : vector<8x1xf32> to vector<8x256xf32>
    %80 = vector.broadcast %78 : vector<1x256xf32> to vector<8x256xf32>
    %81 = arith.mulf %79, %80 : vector<8x256xf32>
    %82 = arith.addf %76, %81 : vector<8x256xf32>
    %83 = vector.extract_strided_slice %3 {offsets = [0, 4], sizes = [8, 1], strides = [1, 1]} : vector<8x8xf32> to vector<8x1xf32>
    %84 = vector.extract_strided_slice %55 {offsets = [4, 0], sizes = [1, 256], strides = [1, 1]} : vector<8x256xf32> to vector<1x256xf32>
    %85 = vector.broadcast %83 : vector<8x1xf32> to vector<8x256xf32>
    %86 = vector.broadcast %84 : vector<1x256xf32> to vector<8x256xf32>
    %87 = arith.mulf %85, %86 : vector<8x256xf32>
    %88 = arith.addf %82, %87 : vector<8x256xf32>
    %89 = vector.extract_strided_slice %3 {offsets = [0, 5], sizes = [8, 1], strides = [1, 1]} : vector<8x8xf32> to vector<8x1xf32>
    %90 = vector.extract_strided_slice %55 {offsets = [5, 0], sizes = [1, 256], strides = [1, 1]} : vector<8x256xf32> to vector<1x256xf32>
    %91 = vector.broadcast %89 : vector<8x1xf32> to vector<8x256xf32>
    %92 = vector.broadcast %90 : vector<1x256xf32> to vector<8x256xf32>
    %93 = arith.mulf %91, %92 : vector<8x256xf32>
    %94 = arith.addf %88, %93 : vector<8x256xf32>
    %95 = vector.extract_strided_slice %3 {offsets = [0, 6], sizes = [8, 1], strides = [1, 1]} : vector<8x8xf32> to vector<8x1xf32>
    %96 = vector.extract_strided_slice %55 {offsets = [6, 0], sizes = [1, 256], strides = [1, 1]} : vector<8x256xf32> to vector<1x256xf32>
    %97 = vector.broadcast %95 : vector<8x1xf32> to vector<8x256xf32>
    %98 = vector.broadcast %96 : vector<1x256xf32> to vector<8x256xf32>
    %99 = arith.mulf %97, %98 : vector<8x256xf32>
    %100 = arith.addf %94, %99 : vector<8x256xf32>
    %101 = vector.extract_strided_slice %3 {offsets = [0, 7], sizes = [8, 1], strides = [1, 1]} : vector<8x8xf32> to vector<8x1xf32>
    %102 = vector.extract_strided_slice %55 {offsets = [7, 0], sizes = [1, 256], strides = [1, 1]} : vector<8x256xf32> to vector<1x256xf32>
    %103 = vector.broadcast %101 : vector<8x1xf32> to vector<8x256xf32>
    %104 = vector.broadcast %102 : vector<1x256xf32> to vector<8x256xf32>
    %105 = arith.mulf %103, %104 : vector<8x256xf32>
    %106 = arith.addf %100, %105 : vector<8x256xf32>
    %cst_10 = arith.constant 0.000000e+00 : f32
    %107 = vector.broadcast %cst_10 : f32 to vector<8x256xf32>
    %108 = arith.maximumf %106, %107 : vector<8x256xf32>
    %c0_11 = arith.constant 0 : index
    %c0_12 = arith.constant 0 : index
    %c0_13 = arith.constant 0 : index
    %109 = vector.load %arg7[%c0_11, %c0_12, %c0_13] : memref<1x8x256xf32, #tpu.memory_space<vmem>>, vector<1x8x256xf32>
    %110 = vector.shape_cast %109 : vector<1x8x256xf32> to vector<8x256xf32>
    %111 = vector.shape_cast %108 : vector<8x256xf32> to vector<1x8x256xf32>
    tpu.vector_store %arg7[%c0_11, %c0_12, %c0_13], %111 {strides = array<i32>} : memref<1x8x256xf32, #tpu.memory_space<vmem>>, vector<1x8x256xf32>,
    return
  }
  func.func @transform_0(%arg0: i32, %arg1: i32) -> (i32, i32, i32) {
    %c0_i32 = arith.constant 0 : i32
    %c0_i32_0 = arith.constant 0 : i32
    return %arg0, %c0_i32, %arg1 : i32, i32, i32
  }
  func.func @transform_1(%arg0: i32, %arg1: i32) -> (i32, i32) {
    %c0_i32 = arith.constant 0 : i32
    %c0_i32_0 = arith.constant 0 : i32
    %c0_i32_1 = arith.constant 0 : i32
    return %c0_i32, %c0_i32_0 : i32, i32
  }
  func.func @transform_2(%arg0: i32, %arg1: i32) -> (i32, i32) {
    %c0_i32 = arith.constant 0 : i32
    %c0_i32_0 = arith.constant 0 : i32
    %c0_i32_1 = arith.constant 0 : i32
    return %c0_i32, %c0_i32_0 : i32, i32
  }
  func.func @transform_3(%arg0: i32, %arg1: i32) -> (i32, i32) {
    %c0_i32 = arith.constant 0 : i32
    %c0_i32_0 = arith.constant 0 : i32
    %c0_i32_1 = arith.constant 0 : i32
    return %c0_i32, %c0_i32_0 : i32, i32
  }
  func.func @transform_4(%arg0: i32, %arg1: i32) -> (i32, i32) {
    %c0_i32 = arith.constant 0 : i32
    %c0_i32_0 = arith.constant 0 : i32
    %c0_i32_1 = arith.constant 0 : i32
    return %c0_i32, %c0_i32_0 : i32, i32
  }
  func.func @transform_5(%arg0: i32, %arg1: i32) -> (i32, i32, i32) {
    %c0_i32 = arith.constant 0 : i32
    %c0_i32_0 = arith.constant 0 : i32
    return %arg0, %c0_i32, %arg1 : i32, i32, i32
  }
}

</mosaic_0001>

<llo_original>
// kernel: tpu_custom_call.1
$region0: #{tpu_custom_call.1}
  #allocation0 [shape = 'u32[]', space=smem, size = 0x4, offset = 0x4, fixed_abs, tag = 'smem constant byte address 0x4 - core index']
  #allocation1 [shape = 'u32[72,128]{1,0:T(1,128)}', space=vmem, size = 0x9000, scoped, tag = 'internal scratch']
  %s0 = inlined_call_operand.hbm [shape: f32[2,8,256], index: 0, kind: input, shape index: {}]
  %s1 = inlined_call_operand.vmem [shape: f32[8,8], index: 1, kind: input, shape index: {}]
  %s2 = inlined_call_operand.vmem [shape: f32[8,1], index: 2, kind: input, shape index: {}]
  %s3 = inlined_call_operand.vmem [shape: f32[8,8], index: 3, kind: input, shape index: {}]
  %s4 = inlined_call_operand.vmem [shape: f32[8,1], index: 4, kind: input, shape index: {}]
  %s5 = inlined_call_operand.hbm [shape: f32[2,8,256], index: 5, kind: output, shape index: {}]
  %s6 = sld [smem:[#allocation0]]
  $region57: #{tpu_custom_call.1} parent=0
    _
  %s8 = ssub.s32 1, %s6
  %s9 = scalar_select 0, %s8, %s6
  $region1: #{tpu_custom_call.1} parent=0
    #allocation2 [shape = 'u8[16384]{0}', space=vmem, size = 0x4000, scoped, tag = 'input window, operand 0']
    #allocation3 [shape = 's32[2]{0}', space=sflag, size = 0x8, scoped, tag = 'scoped memory for tpu_custom_call.1']
    #allocation4 [shape = 's32[2]{0}', space=sflag, size = 0x8, scoped, tag = 'scoped memory for tpu_custom_call.1']
    #allocation5 [shape = 'u8[16384]{0}', space=vmem, size = 0x4000, scoped, tag = 'output window, operand 0']
    %10 = vsyncpa [#allocation3], 0
    %s11 = scalar_lea.sflag [#allocation3], 1
    %12 = vsyncpa %s11, 0
    %13 = vsyncpa [#allocation4], 0
    %s14 = scalar_lea.sflag [#allocation4], 1
    %15 = vsyncpa %s14, 0
    loop: start=0, step=1, limit=4
    $region2: #{tpu_custom_call.1} parent=1 // loop_pre_header
      _
    $region3: #{tpu_custom_call.1} parent=1 // loop_header
      %s17 = sphi 0, %s21
      %p18 = scmp.ge.s32.totalorder %s17, 4
      %s24 = sphi 0, %s36
      %s25 = sphi 0, %s32
      %s26 = sphi 0, %s24
      %s27 = sphi 0, %s25
      %s28 = sphi 0, %s26
      %s29 = sphi 0, %s27
      %s41 = sphi 0, %s43
      %s44 = sphi 0, %s41
      %s45 = sphi 0, %s44
      %s61 = sphi 0, %s45
      %s65 = sphi 0, %s65
      %s67 = sphi 0, %s65
      %s68 = sphi 0, %s67
      %s82 = sphi 0, %s68
      %s86 = sphi 0, %s86
      %s88 = sphi 0, %s86
      %s89 = sphi 0, %s88
      %s103 = sphi 0, %s89
      %s107 = sphi 0, %s107
      %s109 = sphi 0, %s107
      %s110 = sphi 0, %s109
      %s124 = sphi 0, %s110
      %s128 = sphi 0, %s128
      %s130 = sphi 0, %s128
      %s131 = sphi 0, %s130
      %s145 = sphi 0, %s131
      %s153 = sphi 0, %s155
      %s156 = sphi 0, %s153
      %s157 = sphi 0, %s156
      %s173 = sphi 0, %s157
    $region4: #{tpu_custom_call.1} parent=1 // loop_header_branch
      %20 = sbr.rel (%p18) target = $region8
    $region5: #{tpu_custom_call.1} parent=1 // loop_body
      %s22 = ssub.s32 %s17, 1
      %s23 = ssub.s32 %s17, 2
      %s30 = sadd.s32 1, %s25
      %p31 = scmp.ge.s32.totalorder %s30, 1
      %s32 = scalar_select %p31, 0, %s30
      %s33 = sadd.s32 1, %s24
      %s34 = scalar_select %p31, %s33, %s24
      %p35 = scmp.ge.s32.totalorder %s34, 2
      %s36 = scalar_select %p35, 0, %s34
      %s37 = ssub.s32 %s24, %s36
      %s38 = ssub.s32 %s25, %s32
      %s39 = sor.u32 %s37, %s38
      %p40 = scmp.eq.s32.totalorder %s39, 0
      %s42 = sadd.s32 %s41, 1
      %s43 = scalar_select %p40, %s41, %s42
      %p46 = pneg %p40
      %p47 = scmp.eq.s32.totalorder %s17, 1
      %p48 = por %p46, %p47
      %p49 = scmp.ne.s32.totalorder %s41, %s44
      %p50 = scmp.eq.s32.totalorder %s17, 0
      %p51 = por %p49, %p50
      %p52 = scmp.ne.s32.totalorder %s41, %s44
      %p53 = scmp.eq.s32.totalorder %s22, 1
      %p54 = por %p52, %p53
      %p55 = scmp.ne.s32.totalorder %s44, %s45
      %p56 = scmp.eq.s32.totalorder %s22, 0
      %p57 = por %p55, %p56
      %p58 = scmp.ne.s32.totalorder %s44, %s45
      %p59 = scmp.eq.s32.totalorder %s23, 1
      %p60 = por %p58, %p59
      %p62 = scmp.ne.s32.totalorder %s45, %s61
      %p63 = scmp.eq.s32.totalorder %s23, 0
      %p64 = por %p62, %p63
      %s66 = sadd.s32 %s65, 1
      %p69 = scmp.eq.s32.totalorder %s17, 1
      %p70 = scmp.ne.s32.totalorder %s65, %s67
      %p71 = scmp.eq.s32.totalorder %s17, 0
      %p72 = por %p70, %p71
      %p73 = scmp.ne.s32.totalorder %s65, %s67
      %p74 = scmp.eq.s32.totalorder %s22, 1
      %p75 = por %p73, %p74
      %p76 = scmp.ne.s32.totalorder %s67, %s68
      %p77 = scmp.eq.s32.totalorder %s22, 0
      %p78 = por %p76, %p77
      %p79 = scmp.ne.s32.totalorder %s67, %s68
      %p80 = scmp.eq.s32.totalorder %s23, 1
      %p81 = por %p79, %p80
      %p83 = scmp.ne.s32.totalorder %s68, %s82
      %p84 = scmp.eq.s32.totalorder %s23, 0
      %p85 = por %p83, %p84
      %s87 = sadd.s32 %s86, 1
      %p90 = scmp.eq.s32.totalorder %s17, 1
      %p91 = scmp.ne.s32.totalorder %s86, %s88
      %p92 = scmp.eq.s32.totalorder %s17, 0
      %p93 = por %p91, %p92
      %p94 = scmp.ne.s32.totalorder %s86, %s88
      %p95 = scmp.eq.s32.totalorder %s22, 1
      %p96 = por %p94, %p95
      %p97 = scmp.ne.s32.totalorder %s88, %s89
      %p98 = scmp.eq.s32.totalorder %s22, 0
      %p99 = por %p97, %p98
      %p100 = scmp.ne.s32.totalorder %s88, %s89
      %p101 = scmp.eq.s32.totalorder %s23, 1
      %p102 = por %p100, %p101
      %p104 = scmp.ne.s32.totalorder %s89, %s103
      %p105 = scmp.eq.s32.totalorder %s23, 0
      %p106 = por %p104, %p105
      %s108 = sadd.s32 %s107, 1
      %p111 = scmp.eq.s32.totalorder %s17, 1
      %p112 = scmp.ne.s32.totalorder %s107, %s109
      %p113 = scmp.eq.s32.totalorder %s17, 0
      %p114 = por %p112, %p113
      %p115 = scmp.ne.s32.totalorder %s107, %s109
      %p116 = scmp.eq.s32.totalorder %s22, 1
      %p117 = por %p115, %p116
      %p118 = scmp.ne.s32.totalorder %s109, %s110
      %p119 = scmp.eq.s32.totalorder %s22, 0
      %p120 = por %p118, %p119
      %p121 = scmp.ne.s32.totalorder %s109, %s110
      %p122 = scmp.eq.s32.totalorder %s23, 1
      %p123 = por %p121, %p122
      %p125 = scmp.ne.s32.totalorder %s110, %s124
      %p126 = scmp.eq.s32.totalorder %s23, 0
      %p127 = por %p125, %p126
      %s129 = sadd.s32 %s128, 1
      %p132 = scmp.eq.s32.totalorder %s17, 1
      %p133 = scmp.ne.s32.totalorder %s128, %s130
      %p134 = scmp.eq.s32.totalorder %s17, 0
      %p135 = por %p133, %p134
      %p136 = scmp.ne.s32.totalorder %s128, %s130
      %p137 = scmp.eq.s32.totalorder %s22, 1
      %p138 = por %p136, %p137
      %p139 = scmp.ne.s32.totalorder %s130, %s131
      %p140 = scmp.eq.s32.totalorder %s22, 0
      %p141 = por %p139, %p140
      %p142 = scmp.ne.s32.totalorder %s130, %s131
      %p143 = scmp.eq.s32.totalorder %s23, 1
      %p144 = por %p142, %p143
      %p146 = scmp.ne.s32.totalorder %s131, %s145
      %p147 = scmp.eq.s32.totalorder %s23, 0
      %p148 = por %p146, %p147
      %s149 = ssub.s32 %s24, %s36
      %s150 = ssub.s32 %s25, %s32
      %s151 = sor.u32 %s149, %s150
      %p152 = scmp.eq.s32.totalorder %s151, 0
      %s154 = sadd.s32 %s153, 1
      %s155 = scalar_select %p152, %s153, %s154
      %p158 = pneg %p152
      %p159 = scmp.eq.s32.totalorder %s17, 1
      %p160 = por %p158, %p159
      %p161 = scmp.ne.s32.totalorder %s153, %s156
      %p162 = scmp.eq.s32.totalorder %s17, 0
      %p163 = por %p161, %p162
      %p164 = scmp.ne.s32.totalorder %s153, %s156
      %p165 = scmp.eq.s32.totalorder %s22, 1
      %p166 = por %p164, %p165
      %p167 = scmp.ne.s32.totalorder %s156, %s157
      %p168 = scmp.eq.s32.totalorder %s22, 0
      %p169 = por %p167, %p168
      %p170 = scmp.ne.s32.totalorder %s156, %s157
      %p171 = scmp.eq.s32.totalorder %s23, 1
      %p172 = por %p170, %p171
      %p174 = scmp.ne.s32.totalorder %s157, %s173
      %p175 = scmp.eq.s32.totalorder %s23, 0
      %p176 = por %p174, %p175
      %p177 = scmp.le.s32.totalorder 1, %s17
      %p178 = scmp.lt.s32.totalorder %s17, 3
      %p179 = pnand %p177, %p178
      %p180 = pneg %p179
      // Predicated region
      $region9: #{tpu_custom_call.1} parent=5 // pred_check
        _
      $region10: #{tpu_custom_call.1} parent=5 // pred_check_branch
        %182 = sbr.rel (%p179) target = $region12
      $region11: #{tpu_custom_call.1} parent=5 // pred_region
        %s183 = ssub.s32 %s17, 1
        // Predicated region
        $region13: #{tpu_custom_call.1} parent=11 // pred_check
          %p184 = pneg %p78
        $region14: #{tpu_custom_call.1} parent=11 // pred_check_branch
          %186 = sbr.rel (%p184) target = $region16
        $region15: #{tpu_custom_call.1} parent=11 // pred_region
          _
        $region16: #{tpu_custom_call.1} parent=11 // pred_fallthru
          _
        // Predicated region
        $region17: #{tpu_custom_call.1} parent=11 // pred_check
          %p187 = pneg %p99
        $region18: #{tpu_custom_call.1} parent=11 // pred_check_branch
          %189 = sbr.rel (%p187) target = $region20
        $region19: #{tpu_custom_call.1} parent=11 // pred_region
          _
        $region20: #{tpu_custom_call.1} parent=11 // pred_fallthru
          _
        // Predicated region
        $region21: #{tpu_custom_call.1} parent=11 // pred_check
          %p190 = pneg %p120
        $region22: #{tpu_custom_call.1} parent=11 // pred_check_branch
          %192 = sbr.rel (%p190) target = $region24
        $region23: #{tpu_custom_call.1} parent=11 // pred_region
          _
        $region24: #{tpu_custom_call.1} parent=11 // pred_fallthru
          _
        // Predicated region
        $region25: #{tpu_custom_call.1} parent=11 // pred_check
          %p193 = pneg %p141
        $region26: #{tpu_custom_call.1} parent=11 // pred_check_branch
          %195 = sbr.rel (%p193) target = $region28
        $region27: #{tpu_custom_call.1} parent=11 // pred_region
          _
        $region28: #{tpu_custom_call.1} parent=11 // pred_fallthru
          _
      $region12: #{tpu_custom_call.1} parent=5 // pred_fallthru
        _
      %p196 = scmp.lt.s32.totalorder %s17, 2
      // Predicated region
      $region29: #{tpu_custom_call.1} parent=5 // pred_check
        %p197 = pneg %p196
      $region30: #{tpu_custom_call.1} parent=5 // pred_check_branch
        %199 = sbr.rel (%p197) target = $region32
      $region31: #{tpu_custom_call.1} parent=5 // pred_region
        // Predicated region
        $region33: #{tpu_custom_call.1} parent=31 // pred_check
          %p200 = pneg %p51
        $region34: #{tpu_custom_call.1} parent=31 // pred_check_branch
          %202 = sbr.rel (%p200) target = $region36
        $region35: #{tpu_custom_call.1} parent=31 // pred_region
          %s203 = sand.u32 %s41, 1
          %s204 = scalar_lea.sflag [#allocation3], %s203
          %s205 = sand.u32 %s41, 1
          %s206 = smul.addr %s205, 16
          %s207 = scalar_lea.vmem [#allocation2], %s206
          %s208 = smul.u32 2, %s25
          %210 = vsyncadd %s204, 0
          %s211 = smul.addr %s24, 2
          %s212 = sadd.s32 %s208, %s211
          %s213 = smul.addr %s212, 8
          %s214 = scalar_lea.hbm %s0, %s213
          %s216 = sshll.u32 %s214, 4
          %s217 = int_to_ptr.hbm [resolvable:$true] %s216
          %s218 = sshll.u32 %s207, 4
          %s219 = int_to_ptr.vmem [resolvable:$true] %s218
          %221 = dma.hbm_to_vmem [thread:$0]  %s217, 256, %s219, %s204
        $region36: #{tpu_custom_call.1} parent=31 // pred_fallthru
          _
      $region32: #{tpu_custom_call.1} parent=5 // pred_fallthru
        _
      %p222 = scmp.le.s32.totalorder 1, %s17
      %p223 = scmp.lt.s32.totalorder %s17, 3
      %p224 = pnand %p222, %p223
      %p225 = pneg %p224
      // Predicated region
      $region37: #{tpu_custom_call.1} parent=5 // pred_check
        _
      $region38: #{tpu_custom_call.1} parent=5 // pred_check_branch
        %227 = sbr.rel (%p224) target = $region40
      $region39: #{tpu_custom_call.1} parent=5 // pred_region
        %s228 = ssub.s32 %s17, 1
        %s229 = sand.u32 %s44, 1
        %s230 = scalar_lea.sflag [#allocation3], %s229
        %s231 = sand.u32 %s44, 1
        %s232 = smul.addr %s231, 16
        %s233 = scalar_lea.vmem [#allocation2], %s232
        // Predicated region
        $region41: #{tpu_custom_call.1} parent=39 // pred_check
          %p234 = pneg %p57
        $region42: #{tpu_custom_call.1} parent=39 // pred_check_branch
          %236 = sbr.rel (%p234) target = $region44
        $region43: #{tpu_custom_call.1} parent=39 // pred_region
          %238 = dma.done %s230, 256
        $region44: #{tpu_custom_call.1} parent=39 // pred_fallthru
          _
        %s239 = sand.u32 %s44, 1
        %s240 = scalar_lea.sflag [#allocation3], %s239
        %s241 = sand.u32 %s44, 1
        %s242 = smul.addr %s241, 16
        %s243 = scalar_lea.vmem [#allocation2], %s242
        %p244 = pneg %p57
        %p245 = pneg %p54
        %p246 = pneg %p78
        %p247 = pneg %p75
        %p248 = pneg %p99
        %p249 = pneg %p96
        %p250 = pneg %p120
        %p251 = pneg %p117
        %p252 = pneg %p141
        %p253 = pneg %p138
        %p254 = pneg %p169
        %p255 = pneg %p166
        %s256 = sand.u32 %s156, 1
        %s257 = scalar_lea.sflag [#allocation4], %s256
        %s258 = sand.u32 %s156, 1
        %s259 = smul.addr %s258, 16
        %s260 = scalar_lea.vmem [#allocation5], %s259
        %s261 = smul.u32 2, %s27
        %s262 = smul.u32 2, %s27
        %v263 = vld [vmem:[%s233] sm:$0xff]
        %v264 = vld [vmem:[%s233 + $0x8] sm:$0xff]
        %v265 = vld [vmem:[%s1] sm:$0xff]
        %v266 = vld [vmem:[%s3] sm:$0xff]
        %v267 = vld [vmem:[%s2] sm:$0xff]
        %269 = vset.pattern.permute.xlu0 0
        %270 = vperm.xlu0 %269, %v265
        %v271 = vpop.permute.xlu0 %270
        %v273 = vperm.slane %v263, 0
        %v274 = vperm.slane %v264, 0
        %v275 = vmul.f32 %v271, %v273
        %v276 = vmul.f32 %v271, %v274
        %278 = vset.pattern.permute.xlu0 0
        %279 = vperm.xlu0 %278, %v267
        %v280 = vpop.permute.xlu0 %279
        %v282 = vadd.f32 %v280, %v275
        %v283 = vadd.f32 %v280, %v276
        %284 = vset.pattern.permute.xlu0 1
        %285 = vperm.xlu0 %284, %v265
        %v286 = vpop.permute.xlu0 %285
        %v288 = vperm.slane %v263, 1
        %v289 = vperm.slane %v264, 1
        %v290 = vmul.f32 %v286, %v288
        %v291 = vmul.f32 %v286, %v289
        %v292 = vadd.f32 %v282, %v290
        %v293 = vadd.f32 %v283, %v291
        %294 = vset.pattern.permute.xlu0 2
        %295 = vperm.xlu0 %294, %v265
        %v296 = vpop.permute.xlu0 %295
        %v298 = vperm.slane %v263, 2
        %v299 = vperm.slane %v264, 2
        %v300 = vmul.f32 %v296, %v298
        %v301 = vmul.f32 %v296, %v299
        %v302 = vadd.f32 %v292, %v300
        %v303 = vadd.f32 %v293, %v301
        %304 = vset.pattern.permute.xlu0 3
        %305 = vperm.xlu0 %304, %v265
        %v306 = vpop.permute.xlu0 %305
        %v308 = vperm.slane %v263, 3
        %v309 = vperm.slane %v264, 3
        %v310 = vmul.f32 %v306, %v308
        %v311 = vmul.f32 %v306, %v309
        %v312 = vadd.f32 %v302, %v310
        %v313 = vadd.f32 %v303, %v311
        %314 = vset.pattern.permute.xlu0 4
        %315 = vperm.xlu0 %314, %v265
        %v316 = vpop.permute.xlu0 %315
        %v318 = vperm.slane %v263, 4
        %v319 = vperm.slane %v264, 4
        %v320 = vmul.f32 %v316, %v318
        %v321 = vmul.f32 %v316, %v319
        %v322 = vadd.f32 %v312, %v320
        %v323 = vadd.f32 %v313, %v321
        %324 = vset.pattern.permute.xlu0 5
        %325 = vperm.xlu0 %324, %v265
        %v326 = vpop.permute.xlu0 %325
        %v328 = vperm.slane %v263, 5
        %v329 = vperm.slane %v264, 5
        %v330 = vmul.f32 %v326, %v328
        %v331 = vmul.f32 %v326, %v329
        %v332 = vadd.f32 %v322, %v330
        %v333 = vadd.f32 %v323, %v331
        %334 = vset.pattern.permute.xlu0 6
        %335 = vperm.xlu0 %334, %v265
        %v336 = vpop.permute.xlu0 %335
        %v338 = vperm.slane %v263, 6
        %v339 = vperm.slane %v264, 6
        %v340 = vmul.f32 %v336, %v338
        %v341 = vmul.f32 %v336, %v339
        %v342 = vadd.f32 %v332, %v340
        %v343 = vadd.f32 %v333, %v341
        %344 = vset.pattern.permute.xlu0 7
        %345 = vperm.xlu0 %344, %v265
        %v346 = vpop.permute.xlu0 %345
        %v348 = vperm.slane %v263, 7
        %v349 = vperm.slane %v264, 7
        %v350 = vmul.f32 %v346, %v348
        %v351 = vmul.f32 %v346, %v349
        %v352 = vadd.f32 %v342, %v350
        %v353 = vadd.f32 %v343, %v351
        %v354 = vmax.f32 %v352, 0.0
        %v355 = vmax.f32 %v353, 0.0
        %v356 = vld [vmem:[%s4] sm:$0xff]
        %358 = vset.pattern.permute.xlu0 0
        %359 = vperm.xlu0 %358, %v356
        %v360 = vpop.permute.xlu0 %359
        %v362 = vadd.f32 %v360, %v263
        %v363 = vadd.f32 %v360, %v264
        %365 = vset.pattern.permute.xlu0 0
        %366 = vperm.xlu0 %365, %v266
        %v367 = vpop.permute.xlu0 %366
        %v369 = vperm.slane %v354, 0
        %v370 = vperm.slane %v355, 0
        %v371 = vmul.f32 %v367, %v369
        %v372 = vmul.f32 %v367, %v370
        %v373 = vadd.f32 %v362, %v371
        %v374 = vadd.f32 %v363, %v372
        %375 = vset.pattern.permute.xlu0 1
        %376 = vperm.xlu0 %375, %v266
        %v377 = vpop.permute.xlu0 %376
        %v379 = vperm.slane %v354, 1
        %v380 = vperm.slane %v355, 1
        %v381 = vmul.f32 %v377, %v379
        %v382 = vmul.f32 %v377, %v380
        %v383 = vadd.f32 %v373, %v381
        %v384 = vadd.f32 %v374, %v382
        %385 = vset.pattern.permute.xlu0 2
        %386 = vperm.xlu0 %385, %v266
        %v387 = vpop.permute.xlu0 %386
        %v389 = vperm.slane %v354, 2
        %v390 = vperm.slane %v355, 2
        %v391 = vmul.f32 %v387, %v389
        %v392 = vmul.f32 %v387, %v390
        %v393 = vadd.f32 %v383, %v391
        %v394 = vadd.f32 %v384, %v392
        %395 = vset.pattern.permute.xlu0 3
        %396 = vperm.xlu0 %395, %v266
        %v397 = vpop.permute.xlu0 %396
        %v399 = vperm.slane %v354, 3
        %v400 = vperm.slane %v355, 3
        %v401 = vmul.f32 %v397, %v399
        %v402 = vmul.f32 %v397, %v400
        %v403 = vadd.f32 %v393, %v401
        %v404 = vadd.f32 %v394, %v402
        %405 = vset.pattern.permute.xlu0 4
        %406 = vperm.xlu0 %405, %v266
        %v407 = vpop.permute.xlu0 %406
        %v409 = vperm.slane %v354, 4
        %v410 = vperm.slane %v355, 4
        %v411 = vmul.f32 %v407, %v409
        %v412 = vmul.f32 %v407, %v410
        %v413 = vadd.f32 %v403, %v411
        %v414 = vadd.f32 %v404, %v412
        %415 = vset.pattern.permute.xlu0 5
        %416 = vperm.xlu0 %415, %v266
        %v417 = vpop.permute.xlu0 %416
        %v419 = vperm.slane %v354, 5
        %v420 = vperm.slane %v355, 5
        %v421 = vmul.f32 %v417, %v419
        %v422 = vmul.f32 %v417, %v420
        %v423 = vadd.f32 %v413, %v421
        %v424 = vadd.f32 %v414, %v422
        %425 = vset.pattern.permute.xlu0 6
        %426 = vperm.xlu0 %425, %v266
        %v427 = vpop.permute.xlu0 %426
        %v429 = vperm.slane %v354, 6
        %v430 = vperm.slane %v355, 6
        %v431 = vmul.f32 %v427, %v429
        %v432 = vmul.f32 %v427, %v430
        %v433 = vadd.f32 %v423, %v431
        %v434 = vadd.f32 %v424, %v432
        %435 = vset.pattern.permute.xlu0 7
        %436 = vperm.xlu0 %435, %v266
        %v437 = vpop.permute.xlu0 %436
        %v439 = vperm.slane %v354, 7
        %v440 = vperm.slane %v355, 7
        %v441 = vmul.f32 %v437, %v439
        %v442 = vmul.f32 %v437, %v440
        %v443 = vadd.f32 %v433, %v441
        %v444 = vadd.f32 %v434, %v442
        %v445 = vmax.f32 %v443, 0.0
        %v446 = vmax.f32 %v444, 0.0
        %447 = vst [vmem:[%s260] sm:$0xff] %v445
        %448 = vst [vmem:[%s260 + $0x8] sm:$0xff] %v446
        %s449 = sand.u32 %s156, 1
        %s450 = scalar_lea.sflag [#allocation4], %s449
        %s451 = sand.u32 %s156, 1
        %s452 = smul.addr %s451, 16
        %s453 = scalar_lea.vmem [#allocation5], %s452
        // Predicated region
        $region45: #{tpu_custom_call.1} parent=39 // pred_check
          %p454 = pneg %p166
        $region46: #{tpu_custom_call.1} parent=39 // pred_check_branch
          %456 = sbr.rel (%p454) target = $region48
        $region47: #{tpu_custom_call.1} parent=39 // pred_region
          %s457 = smul.u32 2, %s27
          %459 = vsyncadd %s450, 0
          %s460 = smul.addr %s26, 2
          %s461 = sadd.s32 %s457, %s460
          %s462 = smul.addr %s461, 8
          %s463 = scalar_lea.hbm %s5, %s462
          %s465 = sshll.u32 %s453, 4
          %s466 = int_to_ptr.vmem [resolvable:$true] %s465
          %s467 = sshll.u32 %s463, 4
          %s468 = int_to_ptr.hbm [resolvable:$true] %s467
          %470 = dma.vmem_to_hbm [thread:$0]  %s466, 256, %s468, %s450
        $region48: #{tpu_custom_call.1} parent=39 // pred_fallthru
          _
      $region40: #{tpu_custom_call.1} parent=5 // pred_fallthru
        _
      %p471 = scmp.le.s32.totalorder 2, %s17
      // Predicated region
      $region49: #{tpu_custom_call.1} parent=5 // pred_check
        %p472 = pneg %p471
      $region50: #{tpu_custom_call.1} parent=5 // pred_check_branch
        %474 = sbr.rel (%p472) target = $region52
      $region51: #{tpu_custom_call.1} parent=5 // pred_region
        %s475 = ssub.s32 %s17, 2
        // Predicated region
        $region53: #{tpu_custom_call.1} parent=51 // pred_check
          %p476 = pneg %p172
        $region54: #{tpu_custom_call.1} parent=51 // pred_check_branch
          %478 = sbr.rel (%p476) target = $region56
        $region55: #{tpu_custom_call.1} parent=51 // pred_region
          %s479 = sand.u32 %s157, 1
          %s480 = scalar_lea.sflag [#allocation4], %s479
          %s481 = sand.u32 %s157, 1
          %s482 = smul.addr %s481, 16
          %s483 = scalar_lea.vmem [#allocation5], %s482
          %485 = dma.done %s480, 256
        $region56: #{tpu_custom_call.1} parent=51 // pred_fallthru
          _
      $region52: #{tpu_custom_call.1} parent=5 // pred_fallthru
        _
    $region6: #{tpu_custom_call.1} parent=1 // loop_footer
      %s21 = sadd.s32 1, %s17
    $region7: #{tpu_custom_call.1} parent=1 // loop_footer_branch
      %16 = sbr.rel target = $region3
    $region8: #{tpu_custom_call.1} parent=1 // loop_exit
      _
    %486 = vsyncpa [#allocation3], 1
    %s487 = scalar_lea.sflag [#allocation3], 1
    %488 = vsyncpa %s487, 1
    %489 = vsyncpa [#allocation4], 1
    %s490 = scalar_lea.sflag [#allocation4], 1
    %491 = vsyncpa %s490, 1

</llo_original>
